<compile_context>
chip_gen: v7x
topology: tpu7x:2x2x1
jax: 0.10.0
libtpu: 0.0.40
codegen_flags: <defaults>
</compile_context>

<pallas_src>
import functools

import jax
import jax.numpy as jnp
from jax import lax
from jax.experimental import pallas as pl
from jax.experimental.pallas import tpu as pltpu


def bottleneck_kernel(x_ref, xh_ref, s1_ref, b1_ref, w1_ref, b2_ref, w2_ref,
                      out_ref, stacked_ref, *, valid_len):
    # x_ref      : (1, C, T)        input L-tile (one batch element)
    # xh_ref     : (n_t, C, 2)      halo columns of x, resident: [t,:,0]=x[.., t*T-1], [t,:,1]=x[.., t*T+T]
    # s1/b1      : (C, 1)           folded BN1 scale/shift (f32)
    # w1         : (4G, C)          1x1 conv weight with BN2 scale folded in (bf16)
    # b2         : (4G, 1)          BN2 shift (f32)
    # w2         : (Gp, 3*4G)       3-tap conv weight, tap-major blocks [k*4G:(k+1)*4G] (bf16)
    # out        : (1, Gp + C, T)   concat([conv2_out (padded to Gp rows), x], channel axis)
    # stacked_ref: (3*4G, T) bf16   VMEM scratch holding the fused conv2 operand
    # valid_len  : static int or None; true sequence length when L was lane-padded
    t = pl.program_id(1)

    x = x_ref[0]                                                   # (C, T) f32
    C4 = w1_ref.shape[0]
    Gp = w2_ref.shape[0]
    T = x.shape[-1]

    # BN1 + ReLU (f32 on VPU) on the tile and on its two halo columns (same pointwise path).
    h = jnp.maximum(x * s1_ref[...] + b1_ref[...], 0.0)            # (C, T)
    xh = xh_ref[t]                                                 # (C, 2)
    hh = jnp.maximum(xh * s1_ref[...] + b1_ref[...], 0.0)          # (C, 2)

    # Conv1d(k=1) with BN2 scale folded into the weight -> MXU matmul (bf16 in, f32 acc).
    y1 = jnp.dot(w1_ref[...], h.astype(jnp.bfloat16),
                 preferred_element_type=jnp.float32)               # (4G, T)
    y1h = jnp.dot(w1_ref[...], hh.astype(jnp.bfloat16),
                  preferred_element_type=jnp.float32)              # (4G, 2)

    # BN2 shift + ReLU.
    h2 = jnp.maximum(y1 + b2_ref[...], 0.0)                        # (4G, T)
    h2h = jnp.maximum(y1h + b2_ref[...], 0.0)                      # (4G, 2)

    # Lane-index mask is (1, T); jnp.where broadcasts it (no full (4G, T) iota / compares).
    pos = lax.broadcasted_iota(jnp.int32, (1, T), 1)

    if valid_len is not None:
        # L was lane-padded in the wrapper: zero h2 past the true sequence end so the conv's
        # zero padding lives at position `valid_len`, not at the padded tile end.
        h2 = jnp.where(pos + t * T < valid_len, h2, 0.0)
        right_ok = (t + 1) * T < valid_len
    else:
        right_ok = t < pl.num_programs(1) - 1

    # Conv zero-padding applied in h2-space at the true sequence boundary.
    zcol = jnp.zeros((C4, 1), jnp.float32)
    h2_left = jnp.where(t > 0, h2h[:, 0:1], zcol)                  # (4G, 1)
    h2_right = jnp.where(right_ok, h2h[:, 1:2], zcol)              # (4G, 1)

    # Build the tap-major (3*4G, T) conv2 operand directly in the bf16 scratch:
    # rows [0:4G] = h2[l-1], [4G:8G] = h2[l], [8G:12G] = h2[l+1].
    s_m1 = jnp.where(pos == 0, h2_left, pltpu.roll(h2, shift=1, axis=1))
    s_p1 = jnp.where(pos == T - 1, h2_right, pltpu.roll(h2, shift=T - 1, axis=1))
    stacked_ref[0:C4, :] = s_m1.astype(jnp.bfloat16)
    stacked_ref[C4:2 * C4, :] = h2.astype(jnp.bfloat16)
    stacked_ref[2 * C4:, :] = s_p1.astype(jnp.bfloat16)

    # Fused 3-tap conv: one MXU matmul (Gp, 3*4G) x (3*4G, T), f32 accumulation.
    y2 = jnp.dot(w2_ref[...], stacked_ref[...], preferred_element_type=jnp.float32)

    out_ref[0, 0:Gp, :] = y2                                       # sublane-aligned (Gp % 8 == 0)
    out_ref[0, Gp:, :] = x


def _vmem_limit_bytes():
    # Per-generation VMEM budget: ~96 MiB on v5e/v6e (128 MiB physical), ~48 MiB on v7x (64 MiB).
    cap = 64 * 1024 * 1024  # conservative fallback works on every generation
    try:
        cap = int(getattr(pltpu.get_tpu_info(), "vmem_capacity_bytes", cap))
    except Exception:
        pass
    return int(max(32 * 1024 * 1024, min(cap * 3 // 4, 96 * 1024 * 1024)))


def _pick_lane_tile(L_pad, cap, N):
    """Largest multiple of 128 that divides L_pad and is <= cap; prefer even n_t if N is odd."""
    start = max(128, (min(cap, L_pad) // 128) * 128)
    cands = [c for c in range(start, 0, -128) if L_pad % c == 0]
    if not cands:
        return L_pad
    if N % 2 == 1:
        # v7x has 2 TensorCores and both grid axes are parallel; keep the step count even.
        for c in cands:
            if (L_pad // c) % 2 == 0:
                return c
    return cands[0]


def bottleneck_forward(x, params, growth_rate, eps=1e-5, max_lane_tile=1024):
    """x: (N, C, L) float32. Returns (N, growth_rate + C, L) float32."""
    N, C, L = x.shape
    G = growth_rate
    C4 = 4 * G
    Gp = ((G + 7) // 8) * 8     # sublane-aligned concat boundary for the f32 output

    # Fold BatchNorm (inference mode) into scale/shift: y = x*scale + shift.
    s1 = (params["bn1_gamma"] / jnp.sqrt(params["bn1_var"] + eps)).reshape(C, 1)
    b1 = (params["bn1_beta"] - params["bn1_mean"] * s1[:, 0]).reshape(C, 1)
    s2 = params["bn2_gamma"] / jnp.sqrt(params["bn2_var"] + eps)               # (4G,)
    b2 = (params["bn2_beta"] - params["bn2_mean"] * s2).reshape(C4, 1)

    # Fold BN2 scale into conv1's weight (conv1 is linear, bias-free); cast weights to bf16.
    w1f = (s2[:, None] * params["conv1_w"]).astype(jnp.bfloat16)               # (4G, C)
    # Fuse the 3 conv2 taps tap-major: column block k holds conv2_w[:, :, k]; pad rows to Gp.
    w2f = jnp.transpose(params["conv2_w"], (0, 2, 1)).reshape(G, 3 * C4)
    if Gp != G:
        w2f = jnp.pad(w2f, ((0, Gp - G), (0, 0)))
    w2f = w2f.astype(jnp.bfloat16)                                             # (Gp, 3*4G)

    # Always pad L to a multiple of 128 -> lane-dense tiles and unmasked output stores.
    L_pad = ((L + 127) // 128) * 128
    x_p = x if L_pad == L else jnp.pad(x, ((0, 0), (0, 0), (0, L_pad - L)))

    vmem_limit = _vmem_limit_bytes()
    # Per-lane working set: double-buffered f32 in/out tiles + the bf16 stacked scratch.
    bytes_per_lane = 4 * (2 * C + 2 * (Gp + C)) + 2 * 3 * C4
    t_cap = (int(vmem_limit * 0.6) // max(bytes_per_lane, 1)) // 128 * 128
    cap = max(128, min(max_lane_tile, max(t_cap, 128), L_pad))
    T = _pick_lane_tile(L_pad, cap, N)
    n_t = L_pad // T

    # Per-tile halo columns of x. For tile t: left = x[.., t*T-1], right = x[.., t*T+T].
    # Boundary tiles get wrapped garbage here; the kernel zeroes them at the true sequence end.
    first_cols = x_p[:, :, ::T]                     # (N, C, n_t) first column of each tile
    last_cols = x_p[:, :, T - 1::T]                 # (N, C, n_t) last column of each tile
    left_halo = jnp.roll(last_cols, 1, axis=-1)     # [t] = x[.., t*T-1]
    right_halo = jnp.roll(first_cols, -1, axis=-1)  # [t] = x[.., t*T+T]
    x_halo = jnp.transpose(jnp.stack([left_halo, right_halo], axis=-1),
                           (0, 2, 1, 3))            # (N, n_t, C, 2)

    valid_len = None if L_pad == L else L
    kernel = functools.partial(bottleneck_kernel, valid_len=valid_len)

    grid_spec = pltpu.PrefetchScalarGridSpec(
        num_scalar_prefetch=0,
        grid=(N, n_t),
        in_specs=[
            pl.BlockSpec((1, C, T), lambda n, t: (n, 0, t)),              # x tile
            pl.BlockSpec((pl.Squeezed(), n_t, C, 2),
                         lambda n, t: (n, 0, 0, 0)),                      # halos (resident per batch row)
            pl.BlockSpec((C, 1), lambda n, t: (0, 0)),                    # s1
            pl.BlockSpec((C, 1), lambda n, t: (0, 0)),                    # b1
            pl.BlockSpec((C4, C), lambda n, t: (0, 0)),                   # w1 (bf16, BN2 folded)
            pl.BlockSpec((C4, 1), lambda n, t: (0, 0)),                   # b2
            pl.BlockSpec((Gp, 3 * C4), lambda n, t: (0, 0)),              # w2 fused (bf16)
        ],
        out_specs=pl.BlockSpec((1, Gp + C, T), lambda n, t: (n, 0, t)),
        scratch_shapes=[pltpu.VMEM((3 * C4, T), jnp.bfloat16)],
    )

    out = pl.pallas_call(
        kernel,
        out_shape=jax.ShapeDtypeStruct((N, Gp + C, L_pad), jnp.float32),
        grid_spec=grid_spec,
        compiler_params=pltpu.CompilerParams(
            dimension_semantics=("parallel", "parallel"),
            vmem_limit_bytes=vmem_limit,
        ),
    )(x_p, x_halo, s1, b1, w1f, b2, w2f)

    # TODO(synk): with input_output_aliases the slicing/reassembly below (and the x passthrough
    # store) disappears entirely for stacked DenseNet layers.
    if Gp != G:
        out = jnp.concatenate([out[:, :G, :L], out[:, Gp:, :L]], axis=1)
    elif L_pad != L:
        out = out[:, :, :L]
    return out


def bottleneck_reference(x, params, growth_rate, eps=1e-5):
    """Pure-JAX f32 reference (inference-mode BN), NCL layout, same as the PyTorch forward."""
    G = growth_rate
    h = (x - params["bn1_mean"][None, :, None]) / jnp.sqrt(params["bn1_var"][None, :, None] + eps)
    h = h * params["bn1_gamma"][None, :, None] + params["bn1_beta"][None, :, None]
    h = jnp.maximum(h, 0.0)
    y1 = jnp.einsum("oc,ncl->nol", params["conv1_w"], h)
    h2 = (y1 - params["bn2_mean"][None, :, None]) / jnp.sqrt(params["bn2_var"][None, :, None] + eps)
    h2 = h2 * params["bn2_gamma"][None, :, None] + params["bn2_beta"][None, :, None]
    h2 = jnp.maximum(h2, 0.0)
    h2p = jnp.pad(h2, ((0, 0), (0, 0), (1, 1)))
    L = x.shape[-1]
    y2 = jnp.zeros((x.shape[0], G, L), jnp.float32)
    for k in range(3):
        y2 = y2 + jnp.einsum("oc,ncl->nol", params["conv2_w"][:, :, k], h2p[:, :, k:k + L])
    return jnp.concatenate([y2, x], axis=1)


def init_params(key, in_planes, growth_rate):
    C, G = in_planes, growth_rate
    C4 = 4 * G
    ks = jax.random.split(key, 8)
    return {
        "bn1_gamma": jax.random.uniform(ks[0], (C,), jnp.float32, 0.5, 1.5),
        "bn1_beta": jax.random.normal(ks[1], (C,), jnp.float32) * 0.1,
        "bn1_mean": jax.random.normal(ks[2], (C,), jnp.float32) * 0.1,
        "bn1_var": jax.random.uniform(ks[3], (C,), jnp.float32, 0.5, 1.5),
        "conv1_w": jax.random.normal(ks[4], (C4, C), jnp.float32) * 0.1,
        "bn2_gamma": jax.random.uniform(ks[5], (C4,), jnp.float32, 0.5, 1.5),
        "bn2_beta": jax.random.normal(ks[6], (C4,), jnp.float32) * 0.1,
        "bn2_mean": jnp.zeros((C4,), jnp.float32),
        "bn2_var": jnp.ones((C4,), jnp.float32),
        "conv2_w": jax.random.normal(ks[7], (G, C4, 3), jnp.float32) * 0.1,
    }


if __name__ == "__main__":
    # Main config: L multiple of 128, two length tiles per batch row (exercises the halo path).
    in_planes, growth_rate = 8, 8
    N, L = 2, 512

    key = jax.random.PRNGKey(0)
    k_x, k_p = jax.random.split(key)
    x = jax.random.normal(k_x, (N, in_planes, L), jnp.float32)
    params = init_params(k_p, in_planes, growth_rate)

    out = bottleneck_forward(x, params, growth_rate, max_lane_tile=256)
    out = jax.block_until_ready(out)
    ref = bottleneck_reference(x, params, growth_rate)
    assert out.shape == (N, growth_rate + in_planes, L)
    # bf16 MXU operands with f32 accumulation -> looser tolerance than pure f32.
    assert jnp.allclose(out, ref, atol=2e-2, rtol=2e-2), "mismatch vs reference (L=512)"

    # Robustness config: L not a multiple of 128 (lane-padded path) and growth_rate not a
    # multiple of 8 (padded, sublane-aligned concat boundary).
    in_planes2, growth_rate2 = 8, 12
    N2, L2 = 2, 500
    k_x2, k_p2 = jax.random.split(jax.random.PRNGKey(1))
    x2 = jax.random.normal(k_x2, (N2, in_planes2, L2), jnp.float32)
    params2 = init_params(k_p2, in_planes2, growth_rate2)
    out2 = jax.block_until_ready(bottleneck_forward(x2, params2, growth_rate2))
    ref2 = bottleneck_reference(x2, params2, growth_rate2)
    assert out2.shape == (N2, growth_rate2 + in_planes2, L2)
    assert jnp.allclose(out2, ref2, atol=2e-2, rtol=2e-2), "mismatch vs reference (padded)"

    print("KERNEL_OK")
</pallas_src>

<mosaic_0001>
module attributes {stable_mosaic.version = 11 : i64} {
  func.func @bottleneck_kernel(%arg0: i32, %arg1: i32, %arg2: memref<1x8x256xf32, #tpu.memory_space<vmem>>, %arg3: memref<1x2x8x2xf32, #tpu.memory_space<vmem>>, %arg4: memref<8x1xf32, #tpu.memory_space<vmem>>, %arg5: memref<8x1xf32, #tpu.memory_space<vmem>>, %arg6: memref<32x8xbf16, #tpu.memory_space<vmem>>, %arg7: memref<32x1xf32, #tpu.memory_space<vmem>>, %arg8: memref<8x96xbf16, #tpu.memory_space<vmem>>, %arg9: memref<1x16x256xf32, #tpu.memory_space<vmem>>, %arg10: memref<96x256xbf16, #tpu.memory_space<vmem>>) attributes {dimension_semantics = [#tpu.dimension_semantics<parallel>, #tpu.dimension_semantics<parallel>], iteration_bounds = array<i64: 2, 2>, scalar_prefetch = 0 : i64, scratch_operands = 1 : i64, tpu.core_type = #tpu.core_type<tc>, window_params = [{transform_indices = @transform_0, window_bounds = array<i64: 1, 8, 256>}, {transform_indices = @transform_1, window_bounds = array<i64: 1, 2, 8, 2>}, {pipeline_mode = #tpu.pipeline_mode<synchronous>, transform_indices = @transform_2, window_bounds = array<i64: 8, 1>}, {pipeline_mode = #tpu.pipeline_mode<synchronous>, transform_indices = @transform_3, window_bounds = array<i64: 8, 1>}, {pipeline_mode = #tpu.pipeline_mode<synchronous>, transform_indices = @transform_4, window_bounds = array<i64: 32, 8>}, {pipeline_mode = #tpu.pipeline_mode<synchronous>, transform_indices = @transform_5, window_bounds = array<i64: 32, 1>}, {pipeline_mode = #tpu.pipeline_mode<synchronous>, transform_indices = @transform_6, window_bounds = array<i64: 8, 96>}, {transform_indices = @transform_7, window_bounds = array<i64: 1, 16, 256>}]} {
    %c0 = arith.constant 0 : index
    %c0_0 = arith.constant 0 : index
    %c0_1 = arith.constant 0 : index
    %0 = vector.load %arg2[%c0, %c0_0, %c0_1] : memref<1x8x256xf32, #tpu.memory_space<vmem>>, vector<1x8x256xf32>
    %1 = vector.shape_cast %0 : vector<1x8x256xf32> to vector<8x256xf32>
    %c0_2 = arith.constant 0 : index
    %c0_3 = arith.constant 0 : index
    %2 = vector.load %arg4[%c0_2, %c0_3] : memref<8x1xf32, #tpu.memory_space<vmem>>, vector<8x1xf32>
    %3 = vector.broadcast %2 : vector<8x1xf32> to vector<8x256xf32>
    %4 = arith.mulf %1, %3 : vector<8x256xf32>
    %c0_4 = arith.constant 0 : index
    %c0_5 = arith.constant 0 : index
    %5 = vector.load %arg5[%c0_4, %c0_5] : memref<8x1xf32, #tpu.memory_space<vmem>>, vector<8x1xf32>
    %6 = vector.broadcast %5 : vector<8x1xf32> to vector<8x256xf32>
    %7 = arith.addf %4, %6 : vector<8x256xf32>
    %cst = arith.constant 0.000000e+00 : f32
    %8 = vector.broadcast %cst : f32 to vector<8x256xf32>
    %9 = arith.maximumf %7, %8 : vector<8x256xf32>
    %c0_6 = arith.constant 0 : index
    %10 = arith.index_cast %arg1 : i32 to index
    %c0_7 = arith.constant 0 : index
    %c0_8 = arith.constant 0 : index
    %11 = vector.load %arg3[%c0_6, %10, %c0_7, %c0_8] : memref<1x2x8x2xf32, #tpu.memory_space<vmem>>, vector<1x1x8x2xf32>
    %12 = vector.shape_cast %11 : vector<1x1x8x2xf32> to vector<8x2xf32>
    %c0_9 = arith.constant 0 : index
    %c0_10 = arith.constant 0 : index
    %13 = vector.load %arg4[%c0_9, %c0_10] : memref<8x1xf32, #tpu.memory_space<vmem>>, vector<8x1xf32>
    %14 = vector.broadcast %13 : vector<8x1xf32> to vector<8x2xf32>
    %15 = arith.mulf %12, %14 : vector<8x2xf32>
    %c0_11 = arith.constant 0 : index
    %c0_12 = arith.constant 0 : index
    %16 = vector.load %arg5[%c0_11, %c0_12] : memref<8x1xf32, #tpu.memory_space<vmem>>, vector<8x1xf32>
    %17 = vector.broadcast %16 : vector<8x1xf32> to vector<8x2xf32>
    %18 = arith.addf %15, %17 : vector<8x2xf32>
    %cst_13 = arith.constant 0.000000e+00 : f32
    %19 = vector.broadcast %cst_13 : f32 to vector<8x2xf32>
    %20 = arith.maximumf %18, %19 : vector<8x2xf32>
    %c0_14 = arith.constant 0 : index
    %c0_15 = arith.constant 0 : index
    %21 = vector.load %arg6[%c0_14, %c0_15] : memref<32x8xbf16, #tpu.memory_space<vmem>>, vector<32x8xbf16>
    %22 = arith.truncf %9 : vector<8x256xf32> to vector<8x256xbf16>
    %cst_16 = arith.constant dense<0.000000e+00> : vector<32x256xf32>
    %23 = tpu.matmul %21, %22, %cst_16 {dimension_numbers = #tpu.dot_dimension_numbers<[1], [0], [0], [1], [0, 0, 1, 1], [], []>} : vector<32x8xbf16>, vector<8x256xbf16>, vector<32x256xf32> -> vector<32x256xf32>
    %c0_17 = arith.constant 0 : index
    %c0_18 = arith.constant 0 : index
    %24 = vector.load %arg6[%c0_17, %c0_18] : memref<32x8xbf16, #tpu.memory_space<vmem>>, vector<32x8xbf16>
    %25 = arith.truncf %20 : vector<8x2xf32> to vector<8x2xbf16>
    %cst_19 = arith.constant dense<0.000000e+00> : vector<32x2xf32>
    %26 = tpu.matmul %24, %25, %cst_19 {dimension_numbers = #tpu.dot_dimension_numbers<[1], [0], [0], [1], [0, 0, 1, 1], [], []>} : vector<32x8xbf16>, vector<8x2xbf16>, vector<32x2xf32> -> vector<32x2xf32>
    %c0_20 = arith.constant 0 : index
    %c0_21 = arith.constant 0 : index
    %27 = vector.load %arg7[%c0_20, %c0_21] : memref<32x1xf32, #tpu.memory_space<vmem>>, vector<32x1xf32>
    %28 = vector.broadcast %27 : vector<32x1xf32> to vector<32x256xf32>
    %29 = arith.addf %23, %28 : vector<32x256xf32>
    %cst_22 = arith.constant 0.000000e+00 : f32
    %30 = vector.broadcast %cst_22 : f32 to vector<32x256xf32>
    %31 = arith.maximumf %29, %30 : vector<32x256xf32>
    %c0_23 = arith.constant 0 : index
    %c0_24 = arith.constant 0 : index
    %32 = vector.load %arg7[%c0_23, %c0_24] : memref<32x1xf32, #tpu.memory_space<vmem>>, vector<32x1xf32>
    %33 = vector.broadcast %32 : vector<32x1xf32> to vector<32x2xf32>
    %34 = arith.addf %26, %33 : vector<32x2xf32>
    %cst_25 = arith.constant 0.000000e+00 : f32
    %35 = vector.broadcast %cst_25 : f32 to vector<32x2xf32>
    %36 = arith.maximumf %34, %35 : vector<32x2xf32>
    %37 = tpu.iota {dimensions = array<i32: 1>} : vector<1x256xi32>
    %c1_i32 = arith.constant 1 : i32
    %38 = arith.cmpi slt, %arg1, %c1_i32 : i32
    %cst_26 = arith.constant 0.000000e+00 : f32
    %39 = vector.broadcast %cst_26 : f32 to vector<32x1xf32>
    %c0_i32 = arith.constant 0 : i32
    %40 = arith.cmpi sgt, %arg1, %c0_i32 : i32
    %41 = vector.extract_strided_slice %36 {offsets = [0, 0], sizes = [32, 1], strides = [1, 1]} : vector<32x2xf32> to vector<32x1xf32>
    %42 = arith.select %40, %41, %39 : vector<32x1xf32>
    %43 = vector.extract_strided_slice %36 {offsets = [0, 1], sizes = [32, 1], strides = [1, 1]} : vector<32x2xf32> to vector<32x1xf32>
    %44 = arith.select %38, %43, %39 : vector<32x1xf32>
    %c0_i32_27 = arith.constant 0 : i32
    %45 = vector.broadcast %c0_i32_27 : i32 to vector<1x256xi32>
    %46 = arith.cmpi eq, %37, %45 : vector<1x256xi32>
    %c1_i32_28 = arith.constant 1 : i32
    %47 = tpu.dynamic_rotate %31 by %c1_i32_28 dim 1 : vector<32x256xf32>, i32 -> vector<32x256xf32>
    %48 = vector.shape_cast %46 : vector<1x256xi1> to vector<1x256xi1>
    %49 = vector.broadcast %48 : vector<1x256xi1> to vector<32x256xi1>
    %50 = vector.shape_cast %42 : vector<32x1xf32> to vector<32x1xf32>
    %51 = vector.broadcast %50 : vector<32x1xf32> to vector<32x256xf32>
    %52 = arith.select %49, %51, %47 : vector<32x256xi1>, vector<32x256xf32>
    %c255_i32 = arith.constant 255 : i32
    %53 = vector.broadcast %c255_i32 : i32 to vector<1x256xi32>
    %54 = arith.cmpi eq, %37, %53 : vector<1x256xi32>
    %c255_i32_29 = arith.constant 255 : i32
    %55 = tpu.dynamic_rotate %31 by %c255_i32_29 dim 1 : vector<32x256xf32>, i32 -> vector<32x256xf32>
    %56 = vector.shape_cast %54 : vector<1x256xi1> to vector<1x256xi1>
    %57 = vector.broadcast %56 : vector<1x256xi1> to vector<32x256xi1>
    %58 = vector.shape_cast %44 : vector<32x1xf32> to vector<32x1xf32>
    %59 = vector.broadcast %58 : vector<32x1xf32> to vector<32x256xf32>
    %60 = arith.select %57, %59, %55 : vector<32x256xi1>, vector<32x256xf32>
    %61 = arith.truncf %52 : vector<32x256xf32> to vector<32x256xbf16>
    %c0_30 = arith.constant 0 : index
    %c0_31 = arith.constant 0 : index
    %62 = vector.load %arg10[%c0_30, %c0_31] : memref<96x256xbf16, #tpu.memory_space<vmem>>, vector<32x256xbf16>
    tpu.vector_store %arg10[%c0_30, %c0_31], %61 {strides = array<i32>} : memref<96x256xbf16, #tpu.memory_space<vmem>>, vector<32x256xbf16>,
    %63 = arith.truncf %31 : vector<32x256xf32> to vector<32x256xbf16>
    %c32 = arith.constant 32 : index
    %c0_32 = arith.constant 0 : index
    %64 = vector.load %arg10[%c32, %c0_32] : memref<96x256xbf16, #tpu.memory_space<vmem>>, vector<32x256xbf16>
    tpu.vector_store %arg10[%c32, %c0_32], %63 {strides = array<i32>} : memref<96x256xbf16, #tpu.memory_space<vmem>>, vector<32x256xbf16>,
    %65 = arith.truncf %60 : vector<32x256xf32> to vector<32x256xbf16>
    %c64 = arith.constant 64 : index
    %c0_33 = arith.constant 0 : index
    %66 = vector.load %arg10[%c64, %c0_33] : memref<96x256xbf16, #tpu.memory_space<vmem>>, vector<32x256xbf16>
    tpu.vector_store %arg10[%c64, %c0_33], %65 {strides = array<i32>} : memref<96x256xbf16, #tpu.memory_space<vmem>>, vector<32x256xbf16>,
    %c0_34 = arith.constant 0 : index
    %c0_35 = arith.constant 0 : index
    %67 = vector.load %arg8[%c0_34, %c0_35] : memref<8x96xbf16, #tpu.memory_space<vmem>>, vector<8x96xbf16>
    %c0_36 = arith.constant 0 : index
    %c0_37 = arith.constant 0 : index
    %68 = vector.load %arg10[%c0_36, %c0_37] : memref<96x256xbf16, #tpu.memory_space<vmem>>, vector<96x256xbf16>
    %cst_38 = arith.constant dense<0.000000e+00> : vector<8x256xf32>
    %69 = tpu.matmul %67, %68, %cst_38 {dimension_numbers = #tpu.dot_dimension_numbers<[1], [0], [0], [1], [0, 0, 1, 1], [], []>} : vector<8x96xbf16>, vector<96x256xbf16>, vector<8x256xf32> -> vector<8x256xf32>
    %c0_39 = arith.constant 0 : index
    %c0_40 = arith.constant 0 : index
    %c0_41 = arith.constant 0 : index
    %70 = vector.load %arg9[%c0_39, %c0_40, %c0_41] : memref<1x16x256xf32, #tpu.memory_space<vmem>>, vector<1x8x256xf32>
    %71 = vector.shape_cast %70 : vector<1x8x256xf32> to vector<8x256xf32>
    %72 = vector.shape_cast %69 : vector<8x256xf32> to vector<1x8x256xf32>
    tpu.vector_store %arg9[%c0_39, %c0_40, %c0_41], %72 {strides = array<i32>} : memref<1x16x256xf32, #tpu.memory_space<vmem>>, vector<1x8x256xf32>,
    %c0_42 = arith.constant 0 : index
    %c8 = arith.constant 8 : index
    %c0_43 = arith.constant 0 : index
    %73 = vector.load %arg9[%c0_42, %c8, %c0_43] : memref<1x16x256xf32, #tpu.memory_space<vmem>>, vector<1x8x256xf32>
    %74 = vector.shape_cast %73 : vector<1x8x256xf32> to vector<8x256xf32>
    %75 = vector.shape_cast %1 : vector<8x256xf32> to vector<1x8x256xf32>
    tpu.vector_store %arg9[%c0_42, %c8, %c0_43], %75 {strides = array<i32>} : memref<1x16x256xf32, #tpu.memory_space<vmem>>, vector<1x8x256xf32>,
    return
  }
  func.func @transform_0(%arg0: i32, %arg1: i32) -> (i32, i32, i32) {
    %c0_i32 = arith.constant 0 : i32
    %c0_i32_0 = arith.constant 0 : i32
    return %arg0, %c0_i32, %arg1 : i32, i32, i32
  }
  func.func @transform_1(%arg0: i32, %arg1: i32) -> (i32, i32, i32, i32) {
    %c0_i32 = arith.constant 0 : i32
    %c0_i32_0 = arith.constant 0 : i32
    %c0_i32_1 = arith.constant 0 : i32
    %c0_i32_2 = arith.constant 0 : i32
    return %arg0, %c0_i32, %c0_i32_0, %c0_i32_1 : i32, i32, i32, i32
  }
  func.func @transform_2(%arg0: i32, %arg1: i32) -> (i32, i32) {
    %c0_i32 = arith.constant 0 : i32
    %c0_i32_0 = arith.constant 0 : i32
    %c0_i32_1 = arith.constant 0 : i32
    return %c0_i32, %c0_i32_0 : i32, i32
  }
  func.func @transform_3(%arg0: i32, %arg1: i32) -> (i32, i32) {
    %c0_i32 = arith.constant 0 : i32
    %c0_i32_0 = arith.constant 0 : i32
    %c0_i32_1 = arith.constant 0 : i32
    return %c0_i32, %c0_i32_0 : i32, i32
  }
  func.func @transform_4(%arg0: i32, %arg1: i32) -> (i32, i32) {
    %c0_i32 = arith.constant 0 : i32
    %c0_i32_0 = arith.constant 0 : i32
    %c0_i32_1 = arith.constant 0 : i32
    return %c0_i32, %c0_i32_0 : i32, i32
  }
  func.func @transform_5(%arg0: i32, %arg1: i32) -> (i32, i32) {
    %c0_i32 = arith.constant 0 : i32
    %c0_i32_0 = arith.constant 0 : i32
    %c0_i32_1 = arith.constant 0 : i32
    return %c0_i32, %c0_i32_0 : i32, i32
  }
  func.func @transform_6(%arg0: i32, %arg1: i32) -> (i32, i32) {
    %c0_i32 = arith.constant 0 : i32
    %c0_i32_0 = arith.constant 0 : i32
    %c0_i32_1 = arith.constant 0 : i32
    return %c0_i32, %c0_i32_0 : i32, i32
  }
  func.func @transform_7(%arg0: i32, %arg1: i32) -> (i32, i32, i32) {
    %c0_i32 = arith.constant 0 : i32
    %c0_i32_0 = arith.constant 0 : i32
    return %arg0, %c0_i32, %arg1 : i32, i32, i32
  }
}

</mosaic_0001>

<llo_original>
// kernel: tpu_custom_call.1
$region0: #{tpu_custom_call.1}
  #allocation0 [shape = 'u32[]', space=smem, size = 0x4, offset = 0x4, fixed_abs, tag = 'smem constant byte address 0x4 - core index']
  #allocation1 [shape = 'u32[144,128]{1,0:T(1,128)}', space=vmem, size = 0x12000, scoped, tag = 'internal scratch']
  #allocation2 [shape = 'bf16[96,256]{1,0:T(16,128)(2,1)}', space=vmem, size = 0xc000, scoped, tag = 'scratch operand']
  %s0 = inlined_call_operand.vmem [shape: f32[2,8,512], index: 0, kind: input, shape index: {}]
  %s1 = inlined_call_operand.vmem [shape: f32[2,2,8,2], index: 1, kind: input, shape index: {}]
  %s2 = inlined_call_operand.vmem [shape: f32[8,1], index: 2, kind: input, shape index: {}]
  %s3 = inlined_call_operand.vmem [shape: f32[8,1], index: 3, kind: input, shape index: {}]
  %s4 = inlined_call_operand.vmem [shape: bf16[32,8], index: 4, kind: input, shape index: {}]
  %s5 = inlined_call_operand.vmem [shape: f32[32,1], index: 5, kind: input, shape index: {}]
  %s6 = inlined_call_operand.vmem [shape: bf16[8,96], index: 6, kind: input, shape index: {}]
  %s7 = inlined_call_operand.hbm [shape: f32[2,16,512], index: 7, kind: output, shape index: {}]
  %s8 = sld [smem:[#allocation0]]
  $region61: #{tpu_custom_call.1} parent=0
    _
  %s10 = ssub.s32 1, %s8
  %s11 = scalar_select 0, %s10, %s8
  $region1: #{tpu_custom_call.1} parent=0
    #allocation3 [shape = 'u8[32768]{0}', space=vmem, size = 0x8000, scoped, tag = 'output window, operand 0']
    #allocation4 [shape = 's32[2]{0}', space=sflag, size = 0x8, scoped, tag = 'scoped memory for tpu_custom_call.1']
    %12 = vsyncpa [#allocation4], 0
    %s13 = scalar_lea.sflag [#allocation4], 1
    %14 = vsyncpa %s13, 0
    loop: start=0, step=1, limit=6
    $region2: #{tpu_custom_call.1} parent=1 // loop_pre_header
      _
    $region3: #{tpu_custom_call.1} parent=1 // loop_header
      %s16 = sphi 0, %s20
      %p17 = scmp.ge.s32.totalorder %s16, 6
      %s23 = sphi 0, %s35
      %s24 = sphi 0, %s31
      %s25 = sphi 0, %s23
      %s26 = sphi 0, %s24
      %s27 = sphi 0, %s25
      %s28 = sphi 0, %s26
      %s40 = sphi 0, %s42
      %s43 = sphi 0, %s40
      %s44 = sphi 0, %s43
      %s60 = sphi 0, %s44
      %s66 = sphi 0, %s68
      %s69 = sphi 0, %s66
      %s70 = sphi 0, %s69
      %s86 = sphi 0, %s70
      %s90 = sphi 0, %s90
      %s92 = sphi 0, %s90
      %s93 = sphi 0, %s92
      %s107 = sphi 0, %s93
      %s111 = sphi 0, %s111
      %s113 = sphi 0, %s111
      %s114 = sphi 0, %s113
      %s128 = sphi 0, %s114
      %s132 = sphi 0, %s132
      %s134 = sphi 0, %s132
      %s135 = sphi 0, %s134
      %s149 = sphi 0, %s135
      %s153 = sphi 0, %s153
      %s155 = sphi 0, %s153
      %s156 = sphi 0, %s155
      %s170 = sphi 0, %s156
      %s174 = sphi 0, %s174
      %s176 = sphi 0, %s174
      %s177 = sphi 0, %s176
      %s191 = sphi 0, %s177
      %s199 = sphi 0, %s201
      %s202 = sphi 0, %s199
      %s203 = sphi 0, %s202
      %s219 = sphi 0, %s203
    $region4: #{tpu_custom_call.1} parent=1 // loop_header_branch
      %19 = sbr.rel (%p17) target = $region8
    $region5: #{tpu_custom_call.1} parent=1 // loop_body
      %s21 = ssub.s32 %s16, 1
      %s22 = ssub.s32 %s16, 2
      %s29 = sadd.s32 1, %s24
      %p30 = scmp.ge.s32.totalorder %s29, 2
      %s31 = scalar_select %p30, 0, %s29
      %s32 = sadd.s32 1, %s23
      %s33 = scalar_select %p30, %s32, %s23
      %p34 = scmp.ge.s32.totalorder %s33, 2
      %s35 = scalar_select %p34, 0, %s33
      %s36 = ssub.s32 %s23, %s35
      %s37 = ssub.s32 %s24, %s31
      %s38 = sor.u32 %s36, %s37
      %p39 = scmp.eq.s32.totalorder %s38, 0
      %s41 = sadd.s32 %s40, 1
      %s42 = scalar_select %p39, %s40, %s41
      %p45 = pneg %p39
      %p46 = scmp.eq.s32.totalorder %s16, 3
      %p47 = por %p45, %p46
      %p48 = scmp.ne.s32.totalorder %s40, %s43
      %p49 = scmp.eq.s32.totalorder %s16, 0
      %p50 = por %p48, %p49
      %p51 = scmp.ne.s32.totalorder %s40, %s43
      %p52 = scmp.eq.s32.totalorder %s21, 3
      %p53 = por %p51, %p52
      %p54 = scmp.ne.s32.totalorder %s43, %s44
      %p55 = scmp.eq.s32.totalorder %s21, 0
      %p56 = por %p54, %p55
      %p57 = scmp.ne.s32.totalorder %s43, %s44
      %p58 = scmp.eq.s32.totalorder %s22, 3
      %p59 = por %p57, %p58
      %p61 = scmp.ne.s32.totalorder %s44, %s60
      %p62 = scmp.eq.s32.totalorder %s22, 0
      %p63 = por %p61, %p62
      %s64 = ssub.s32 %s23, %s35
      %p65 = scmp.eq.s32.totalorder %s64, 0
      %s67 = sadd.s32 %s66, 1
      %s68 = scalar_select %p65, %s66, %s67
      %p71 = pneg %p65
      %p72 = scmp.eq.s32.totalorder %s16, 3
      %p73 = por %p71, %p72
      %p74 = scmp.ne.s32.totalorder %s66, %s69
      %p75 = scmp.eq.s32.totalorder %s16, 0
      %p76 = por %p74, %p75
      %p77 = scmp.ne.s32.totalorder %s66, %s69
      %p78 = scmp.eq.s32.totalorder %s21, 3
      %p79 = por %p77, %p78
      %p80 = scmp.ne.s32.totalorder %s69, %s70
      %p81 = scmp.eq.s32.totalorder %s21, 0
      %p82 = por %p80, %p81
      %p83 = scmp.ne.s32.totalorder %s69, %s70
      %p84 = scmp.eq.s32.totalorder %s22, 3
      %p85 = por %p83, %p84
      %p87 = scmp.ne.s32.totalorder %s70, %s86
      %p88 = scmp.eq.s32.totalorder %s22, 0
      %p89 = por %p87, %p88
      %s91 = sadd.s32 %s90, 1
      %p94 = scmp.eq.s32.totalorder %s16, 3
      %p95 = scmp.ne.s32.totalorder %s90, %s92
      %p96 = scmp.eq.s32.totalorder %s16, 0
      %p97 = por %p95, %p96
      %p98 = scmp.ne.s32.totalorder %s90, %s92
      %p99 = scmp.eq.s32.totalorder %s21, 3
      %p100 = por %p98, %p99
      %p101 = scmp.ne.s32.totalorder %s92, %s93
      %p102 = scmp.eq.s32.totalorder %s21, 0
      %p103 = por %p101, %p102
      %p104 = scmp.ne.s32.totalorder %s92, %s93
      %p105 = scmp.eq.s32.totalorder %s22, 3
      %p106 = por %p104, %p105
      %p108 = scmp.ne.s32.totalorder %s93, %s107
      %p109 = scmp.eq.s32.totalorder %s22, 0
      %p110 = por %p108, %p109
      %s112 = sadd.s32 %s111, 1
      %p115 = scmp.eq.s32.totalorder %s16, 3
      %p116 = scmp.ne.s32.totalorder %s111, %s113
      %p117 = scmp.eq.s32.totalorder %s16, 0
      %p118 = por %p116, %p117
      %p119 = scmp.ne.s32.totalorder %s111, %s113
      %p120 = scmp.eq.s32.totalorder %s21, 3
      %p121 = por %p119, %p120
      %p122 = scmp.ne.s32.totalorder %s113, %s114
      %p123 = scmp.eq.s32.totalorder %s21, 0
      %p124 = por %p122, %p123
      %p125 = scmp.ne.s32.totalorder %s113, %s114
      %p126 = scmp.eq.s32.totalorder %s22, 3
      %p127 = por %p125, %p126
      %p129 = scmp.ne.s32.totalorder %s114, %s128
      %p130 = scmp.eq.s32.totalorder %s22, 0
      %p131 = por %p129, %p130
      %s133 = sadd.s32 %s132, 1
      %p136 = scmp.eq.s32.totalorder %s16, 3
      %p137 = scmp.ne.s32.totalorder %s132, %s134
      %p138 = scmp.eq.s32.totalorder %s16, 0
      %p139 = por %p137, %p138
      %p140 = scmp.ne.s32.totalorder %s132, %s134
      %p141 = scmp.eq.s32.totalorder %s21, 3
      %p142 = por %p140, %p141
      %p143 = scmp.ne.s32.totalorder %s134, %s135
      %p144 = scmp.eq.s32.totalorder %s21, 0
      %p145 = por %p143, %p144
      %p146 = scmp.ne.s32.totalorder %s134, %s135
      %p147 = scmp.eq.s32.totalorder %s22, 3
      %p148 = por %p146, %p147
      %p150 = scmp.ne.s32.totalorder %s135, %s149
      %p151 = scmp.eq.s32.totalorder %s22, 0
      %p152 = por %p150, %p151
      %s154 = sadd.s32 %s153, 1
      %p157 = scmp.eq.s32.totalorder %s16, 3
      %p158 = scmp.ne.s32.totalorder %s153, %s155
      %p159 = scmp.eq.s32.totalorder %s16, 0
      %p160 = por %p158, %p159
      %p161 = scmp.ne.s32.totalorder %s153, %s155
      %p162 = scmp.eq.s32.totalorder %s21, 3
      %p163 = por %p161, %p162
      %p164 = scmp.ne.s32.totalorder %s155, %s156
      %p165 = scmp.eq.s32.totalorder %s21, 0
      %p166 = por %p164, %p165
      %p167 = scmp.ne.s32.totalorder %s155, %s156
      %p168 = scmp.eq.s32.totalorder %s22, 3
      %p169 = por %p167, %p168
      %p171 = scmp.ne.s32.totalorder %s156, %s170
      %p172 = scmp.eq.s32.totalorder %s22, 0
      %p173 = por %p171, %p172
      %s175 = sadd.s32 %s174, 1
      %p178 = scmp.eq.s32.totalorder %s16, 3
      %p179 = scmp.ne.s32.totalorder %s174, %s176
      %p180 = scmp.eq.s32.totalorder %s16, 0
      %p181 = por %p179, %p180
      %p182 = scmp.ne.s32.totalorder %s174, %s176
      %p183 = scmp.eq.s32.totalorder %s21, 3
      %p184 = por %p182, %p183
      %p185 = scmp.ne.s32.totalorder %s176, %s177
      %p186 = scmp.eq.s32.totalorder %s21, 0
      %p187 = por %p185, %p186
      %p188 = scmp.ne.s32.totalorder %s176, %s177
      %p189 = scmp.eq.s32.totalorder %s22, 3
      %p190 = por %p188, %p189
      %p192 = scmp.ne.s32.totalorder %s177, %s191
      %p193 = scmp.eq.s32.totalorder %s22, 0
      %p194 = por %p192, %p193
      %s195 = ssub.s32 %s23, %s35
      %s196 = ssub.s32 %s24, %s31
      %s197 = sor.u32 %s195, %s196
      %p198 = scmp.eq.s32.totalorder %s197, 0
      %s200 = sadd.s32 %s199, 1
      %s201 = scalar_select %p198, %s199, %s200
      %p204 = pneg %p198
      %p205 = scmp.eq.s32.totalorder %s16, 3
      %p206 = por %p204, %p205
      %p207 = scmp.ne.s32.totalorder %s199, %s202
      %p208 = scmp.eq.s32.totalorder %s16, 0
      %p209 = por %p207, %p208
      %p210 = scmp.ne.s32.totalorder %s199, %s202
      %p211 = scmp.eq.s32.totalorder %s21, 3
      %p212 = por %p210, %p211
      %p213 = scmp.ne.s32.totalorder %s202, %s203
      %p214 = scmp.eq.s32.totalorder %s21, 0
      %p215 = por %p213, %p214
      %p216 = scmp.ne.s32.totalorder %s202, %s203
      %p217 = scmp.eq.s32.totalorder %s22, 3
      %p218 = por %p216, %p217
      %p220 = scmp.ne.s32.totalorder %s203, %s219
      %p221 = scmp.eq.s32.totalorder %s22, 0
      %p222 = por %p220, %p221
      %p223 = scmp.le.s32.totalorder 1, %s16
      %p224 = scmp.lt.s32.totalorder %s16, 5
      %p225 = pnand %p223, %p224
      %p226 = pneg %p225
      // Predicated region
      $region9: #{tpu_custom_call.1} parent=5 // pred_check
        _
      $region10: #{tpu_custom_call.1} parent=5 // pred_check_branch
        %228 = sbr.rel (%p225) target = $region12
      $region11: #{tpu_custom_call.1} parent=5 // pred_region
        %s229 = ssub.s32 %s16, 1
        // Predicated region
        $region13: #{tpu_custom_call.1} parent=11 // pred_check
          %p230 = pneg %p103
        $region14: #{tpu_custom_call.1} parent=11 // pred_check_branch
          %232 = sbr.rel (%p230) target = $region16
        $region15: #{tpu_custom_call.1} parent=11 // pred_region
          _
        $region16: #{tpu_custom_call.1} parent=11 // pred_fallthru
          _
        // Predicated region
        $region17: #{tpu_custom_call.1} parent=11 // pred_check
          %p233 = pneg %p124
        $region18: #{tpu_custom_call.1} parent=11 // pred_check_branch
          %235 = sbr.rel (%p233) target = $region20
        $region19: #{tpu_custom_call.1} parent=11 // pred_region
          _
        $region20: #{tpu_custom_call.1} parent=11 // pred_fallthru
          _
        // Predicated region
        $region21: #{tpu_custom_call.1} parent=11 // pred_check
          %p236 = pneg %p145
        $region22: #{tpu_custom_call.1} parent=11 // pred_check_branch
          %238 = sbr.rel (%p236) target = $region24
        $region23: #{tpu_custom_call.1} parent=11 // pred_region
          _
        $region24: #{tpu_custom_call.1} parent=11 // pred_fallthru
          _
        // Predicated region
        $region25: #{tpu_custom_call.1} parent=11 // pred_check
          %p239 = pneg %p166
        $region26: #{tpu_custom_call.1} parent=11 // pred_check_branch
          %241 = sbr.rel (%p239) target = $region28
        $region27: #{tpu_custom_call.1} parent=11 // pred_region
          _
        $region28: #{tpu_custom_call.1} parent=11 // pred_fallthru
          _
        // Predicated region
        $region29: #{tpu_custom_call.1} parent=11 // pred_check
          %p242 = pneg %p187
        $region30: #{tpu_custom_call.1} parent=11 // pred_check_branch
          %244 = sbr.rel (%p242) target = $region32
        $region31: #{tpu_custom_call.1} parent=11 // pred_region
          _
        $region32: #{tpu_custom_call.1} parent=11 // pred_fallthru
          _
      $region12: #{tpu_custom_call.1} parent=5 // pred_fallthru
        _
      %p245 = scmp.lt.s32.totalorder %s16, 4
      // Predicated region
      $region33: #{tpu_custom_call.1} parent=5 // pred_check
        %p246 = pneg %p245
      $region34: #{tpu_custom_call.1} parent=5 // pred_check_branch
        %248 = sbr.rel (%p246) target = $region36
      $region35: #{tpu_custom_call.1} parent=5 // pred_region
        // Predicated region
        $region37: #{tpu_custom_call.1} parent=35 // pred_check
          %p249 = pneg %p50
        $region38: #{tpu_custom_call.1} parent=35 // pred_check_branch
          %251 = sbr.rel (%p249) target = $region40
        $region39: #{tpu_custom_call.1} parent=35 // pred_region
          %s252 = smul.u32 2, %s24
          %p253 = scmp.lt.s32.totalorder %s23, 1
          %s254 = scalar_select %p253, %s23, 1
          %p255 = scmp.lt.s32.totalorder %s252, 3
          %s256 = scalar_select %p255, %s252, 3
          %s257 = smul.addr %s254, 4
          %s258 = sadd.s32 %s256, %s257
          %s259 = smul.addr %s258, 8
          %s260 = scalar_lea.vmem %s0, %s259
          %s261 = smul.u32 2, %s24
        $region40: #{tpu_custom_call.1} parent=35 // pred_fallthru
          _
        // Predicated region
        $region41: #{tpu_custom_call.1} parent=35 // pred_check
          %p262 = pneg %p76
        $region42: #{tpu_custom_call.1} parent=35 // pred_check_branch
          %264 = sbr.rel (%p262) target = $region44
        $region43: #{tpu_custom_call.1} parent=35 // pred_region
          %p265 = scmp.lt.s32.totalorder %s23, 1
          %s266 = scalar_select %p265, %s23, 1
          %s267 = smul.addr %s266, 2
          %s268 = smul.addr %s267, 8
          %s269 = scalar_lea.vmem %s1, %s268
        $region44: #{tpu_custom_call.1} parent=35 // pred_fallthru
          _
      $region36: #{tpu_custom_call.1} parent=5 // pred_fallthru
        _
      %p270 = scmp.le.s32.totalorder 1, %s16
      %p271 = scmp.lt.s32.totalorder %s16, 5
      %p272 = pnand %p270, %p271
      %p273 = pneg %p272
      // Predicated region
      $region45: #{tpu_custom_call.1} parent=5 // pred_check
        _
      $region46: #{tpu_custom_call.1} parent=5 // pred_check_branch
        %275 = sbr.rel (%p272) target = $region48
      $region47: #{tpu_custom_call.1} parent=5 // pred_region
        %s276 = ssub.s32 %s16, 1
        %s277 = smul.u32 2, %s26
        %p278 = scmp.lt.s32.totalorder %s25, 1
        %s279 = scalar_select %p278, %s25, 1
        %p280 = scmp.lt.s32.totalorder %s277, 3
        %s281 = scalar_select %p280, %s277, 3
        %s282 = smul.addr %s279, 4
        %s283 = sadd.s32 %s281, %s282
        %s284 = smul.addr %s283, 8
        %s285 = scalar_lea.vmem %s0, %s284
        %p286 = pneg %p56
        %p287 = pneg %p53
        %p288 = scmp.lt.s32.totalorder %s25, 1
        %s289 = scalar_select %p288, %s25, 1
        %s290 = smul.addr %s289, 2
        %s291 = smul.addr %s290, 8
        %s292 = scalar_lea.vmem %s1, %s291
        %p293 = pneg %p82
        %p294 = pneg %p79
        %p295 = pneg %p103
        %p296 = pneg %p100
        %p297 = pneg %p124
        %p298 = pneg %p121
        %p299 = pneg %p145
        %p300 = pneg %p142
        %p301 = pneg %p166
        %p302 = pneg %p163
        %p303 = pneg %p187
        %p304 = pneg %p184
        %p305 = pneg %p215
        %p306 = pneg %p212
        %s307 = sand.u32 %s202, 1
        %s308 = scalar_lea.sflag [#allocation4], %s307
        %s309 = sand.u32 %s202, 1
        %s310 = smul.addr %s309, 32
        %s311 = scalar_lea.vmem [#allocation3], %s310
        %s312 = smul.u32 2, %s26
        %p313 = scmp.lt.s32.totalorder %s25, 1
        %s314 = scalar_select %p313, %s25, 1
        %p315 = scmp.lt.s32.totalorder %s312, 3
        %s316 = scalar_select %p315, %s312, 3
        %s317 = smul.addr %s314, 4
        %s318 = sadd.s32 %s316, %s317
        %s319 = smul.addr %s318, 8
        %s320 = scalar_lea.vmem %s0, %s319
        %s321 = smul.u32 2, %s26
        %p322 = scmp.lt.s32.totalorder %s25, 1
        %s323 = scalar_select %p322, %s25, 1
        %s324 = smul.addr %s323, 2
        %s325 = smul.addr %s324, 8
        %s326 = scalar_lea.vmem %s1, %s325
        %s327 = smul.u32 2, %s26
        %v329 = vld [vmem:[%s320] sm:$0xff]
        %v330 = vld [vmem:[%s320 + $0x8] sm:$0xff]
        %v331 = vld [vmem:[%s2] sm:$0xff]
        %333 = vset.pattern.permute.xlu0 0
        %334 = vperm.xlu0 %333, %v331
        %v335 = vpop.permute.xlu0 %334
        %v337 = vmul.f32 %v329, %v335
        %v338 = vmul.f32 %v330, %v335
        %v339 = vld [vmem:[%s3] sm:$0xff]
        %341 = vset.pattern.permute.xlu0 0
        %342 = vperm.xlu0 %341, %v339
        %v343 = vpop.permute.xlu0 %342
        %v345 = vadd.f32 %v337, %v343
        %v346 = vadd.f32 %v338, %v343
        %v347 = vmax.f32 %v345, 0.0
        %v348 = vmax.f32 %v346, 0.0
        %s349 = smul.u32 %s26, 8
        %s350 = scalar_lea.vmem %s326, %s349
        %v351 = vld [vmem:[%s350] sm:$0xff]
        %v352 = vmul.f32 %v351, %v335
        %v353 = vadd.f32 %v352, %v343
        %v354 = vmax.f32 %v353, 0.0
        %v355 = vld [vmem:[%s4] sm:$0xf]
        %v356 = vld [vmem:[%s4 + $0x4] sm:$0xf]
        %v357 = vld [vmem:[%s4 + $0x8] sm:$0xf]
        %v358 = vld [vmem:[%s4 + $0xc] sm:$0xf]
        %v359 = vpack.c.bf16 %v347, %v347
        %v360 = vpack.c.bf16 %v348, %v348
        %v361 = vpack.c.bf16 %v354, %v354
        %v362 = vld [vmem:[%s5] sm:$0xff]
        %v363 = vld [vmem:[%s5 + $0x8] sm:$0xff]
        %v364 = vld [vmem:[%s5 + $0x10] sm:$0xff]
        %v365 = vld [vmem:[%s5 + $0x18] sm:$0xff]
        %367 = vset.pattern.permute.xlu0 0
        %368 = vperm.xlu0 %367, %v362
        %v369 = vpop.permute.xlu0 %368
        %372 = vset.pattern.permute.xlu0 0
        %373 = vperm.xlu0 %372, %v363
        %v374 = vpop.permute.xlu0 %373
        %377 = vset.pattern.permute.xlu0 0
        %378 = vperm.xlu0 %377, %v364
        %v379 = vpop.permute.xlu0 %378
        %382 = vset.pattern.permute.xlu0 0
        %383 = vperm.xlu0 %382, %v365
        %v384 = vpop.permute.xlu0 %383
        %v390 = vunpack.c.l.b16 %v355
        %v391 = vunpack.c.l.b16 %v356
        %v392 = vunpack.c.l.b16 %v357
        %v393 = vunpack.c.l.b16 %v358
        %v394 = vpack.c.b16 %v391, %v390
        %v395 = vpack.c.b16 %v393, %v392
        %vm396 = vcmask 64512
        %v398 = vsel %vm396, %v394, 0
        %v401 = vsel %vm396, %v395, 0
        %vm403 = vcmask 1043456
        %v405 = vsel %vm403, %v359, 0
        %v408 = vsel %vm403, %v360, 0
        %410 = vmatprep.subr.bf16.mxu0 %v408
        %411 = vmatpush1.bf16.msra.mxu0 %v405
        %412 = vmatprep.subr.bf16.mxu0 0
        %413 = vmatpush1.bf16.msra.mxu0 0
        %414 = vmatprep.subr.bf16.mxu0 0
        %415 = vmatpush1.bf16.msra.mxu0 0
        %416 = vmatprep.subr.bf16.mxu0 0
        %417 = vmatpush1.bf16.msra.mxu0 0
        %418 = vmatprep.subr.bf16.mxu0 0
        %419 = vmatpush1.bf16.msra.mxu0 0
        %420 = vmatprep.subr.bf16.mxu0 0
        %421 = vmatpush1.bf16.msra.mxu0 0
        %422 = vmatprep.subr.bf16.mxu0 0
        %423 = vmatpush1.bf16.msra.mxu0 0
        %424 = vmatprep.subr.bf16.mxu0 0
        %425 = vmatpush1.bf16.msra.mxu0 0
        %426 = vmatprep.subr.bf16.mxu0 0
        %427 = vmatpush1.bf16.msra.mxu0 0
        %428 = vmatprep.subr.bf16.mxu0 0
        %429 = vmatpush1.bf16.msra.mxu0 0
        %430 = vmatprep.subr.bf16.mxu0 0
        %431 = vmatpush1.bf16.msra.mxu0 0
        %432 = vmatprep.subr.bf16.mxu0 0
        %433 = vmatpush1.bf16.msra.mxu0 0
        %434 = vmatprep.subr.bf16.mxu0 0
        %435 = vmatpush1.bf16.msra.mxu0 0
        %436 = vmatprep.subr.bf16.mxu0 0
        %437 = vmatpush1.bf16.msra.mxu0 0
        %438 = vmatprep.subr.bf16.mxu0 0
        %439 = vmatpush1.bf16.msra.mxu0 0
        %440 = vmatprep.subr.bf16.mxu0 0
        %441 = vmatpush1.bf16.msra.mxu0 0
        %442 = vmatprep.mubr.bf16.mxu0 0
        %443 = vmatmul.mubr.bf16.gmra.mrb[0].mxu0 %v398
        %v444 = vpop.f32.mrb[0].mxu0
        %v445 = vadd.f32 %v369, %v444
        %v446 = vpop.f32.mrb[0].mxu0
        %v447 = vadd.f32 %v369, %v446
        %v448 = vpop.f32.mrb[0].mxu0
        %v449 = vadd.f32 %v374, %v448
        %v450 = vpop.f32.mrb[0].mxu0
        %v451 = vadd.f32 %v374, %v450
        %452 = vmatprep.mubr.bf16.mxu0 0
        %453 = vmatmul.mubr.bf16.gmra.mrb[0].mxu0 %v401
        %v454 = vpop.f32.mrb[0].mxu0
        %v455 = vadd.f32 %v379, %v454
        %v456 = vpop.f32.mrb[0].mxu0
        %v457 = vadd.f32 %v379, %v456
        %v458 = vpop.f32.mrb[0].mxu0
        %v459 = vadd.f32 %v384, %v458
        %v460 = vpop.f32.mrb[0].mxu0
        %v461 = vadd.f32 %v384, %v460
        %462 = vdwg.mxu0
        %v463 = vmax.f32 %v445, 0.0
        %v464 = vmax.f32 %v447, 0.0
        %v465 = vmax.f32 %v449, 0.0
        %v466 = vmax.f32 %v451, 0.0
        %v467 = vmax.f32 %v455, 0.0
        %v468 = vmax.f32 %v457, 0.0
        %v469 = vmax.f32 %v459, 0.0
        %v470 = vmax.f32 %v461, 0.0
        %v472 = vsel %vm403, %v361, 0
        %474 = vmatprep.subr.bf16.mxu0 0
        %475 = vmatpush1.bf16.msra.mxu0 %v472
        %476 = vmatprep.subr.bf16.mxu0 0
        %477 = vmatpush1.bf16.msra.mxu0 0
        %478 = vmatprep.subr.bf16.mxu0 0
        %479 = vmatpush1.bf16.msra.mxu0 0
        %480 = vmatprep.subr.bf16.mxu0 0
        %481 = vmatpush1.bf16.msra.mxu0 0
        %482 = vmatprep.subr.bf16.mxu0 0
        %483 = vmatpush1.bf16.msra.mxu0 0
        %484 = vmatprep.subr.bf16.mxu0 0
        %485 = vmatpush1.bf16.msra.mxu0 0
        %486 = vmatprep.subr.bf16.mxu0 0
        %487 = vmatpush1.bf16.msra.mxu0 0
        %488 = vmatprep.subr.bf16.mxu0 0
        %489 = vmatpush1.bf16.msra.mxu0 0
        %490 = vmatprep.subr.bf16.mxu0 0
        %491 = vmatpush1.bf16.msra.mxu0 0
        %492 = vmatprep.subr.bf16.mxu0 0
        %493 = vmatpush1.bf16.msra.mxu0 0
        %494 = vmatprep.subr.bf16.mxu0 0
        %495 = vmatpush1.bf16.msra.mxu0 0
        %496 = vmatprep.subr.bf16.mxu0 0
        %497 = vmatpush1.bf16.msra.mxu0 0
        %498 = vmatprep.subr.bf16.mxu0 0
        %499 = vmatpush1.bf16.msra.mxu0 0
        %500 = vmatprep.subr.bf16.mxu0 0
        %501 = vmatpush1.bf16.msra.mxu0 0
        %502 = vmatprep.subr.bf16.mxu0 0
        %503 = vmatpush1.bf16.msra.mxu0 0
        %504 = vmatprep.subr.bf16.mxu0 0
        %505 = vmatpush1.bf16.msra.mxu0 0
        %506 = vmatprep.mubr.bf16.mxu0 0
        %507 = vmatmul.mubr.bf16.gmra.mrb[0].mxu0 %v398
        %v508 = vpop.f32.mrb[0].mxu0
        %v509 = vadd.f32 %v369, %v508
        %v510 = vpop.f32.mrb[0].mxu0
        %v511 = vpop.f32.mrb[0].mxu0
        %v512 = vadd.f32 %v374, %v511
        %v513 = vpop.f32.mrb[0].mxu0
        %514 = vmatprep.mubr.bf16.mxu0 0
        %515 = vmatmul.mubr.bf16.gmra.mrb[0].mxu0 %v401
        %v516 = vpop.f32.mrb[0].mxu0
        %v517 = vadd.f32 %v379, %v516
        %v518 = vpop.f32.mrb[0].mxu0
        %v519 = vpop.f32.mrb[0].mxu0
        %v520 = vadd.f32 %v384, %v519
        %v521 = vpop.f32.mrb[0].mxu0
        %522 = vdwg.mxu0
        %v523 = vmax.f32 %v509, 0.0
        %v524 = vmax.f32 %v512, 0.0
        %v525 = vmax.f32 %v517, 0.0
        %v526 = vmax.f32 %v520, 0.0
        %v527 = vlaneseq
        %v528 = vand.u32 %v527, 127
        %v529 = vadd.s32 %v528, 128
        %p530 = scmp.lt.s32.totalorder %s26, 1
        %p531 = scmp.gt.s32.totalorder %s26, 0
        %s532 = scalar_select %p531, 1, 0
        %v533 = vstv %s532
        %vm534 = vcmp.eq.s32.totalorder %v533, 1
        %v535 = vsel %vm534, %v523, 0.0
        %v536 = vsel %vm534, %v524, 0.0
        %v537 = vsel %vm534, %v525, 0.0
        %v538 = vsel %vm534, %v526, 0.0
        %s539 = scalar_select %p530, 1, 0
        %v540 = vstv %s539
        %vm541 = vcmp.eq.s32.totalorder %v540, 1
        %v542 = vsel %vm541, %v523, 0.0
        %v543 = vsel %vm541, %v524, 0.0
        %v544 = vsel %vm541, %v525, 0.0
        %v545 = vsel %vm541, %v526, 0.0
        %vm546 = vcmp.eq.s32.totalorder %v528, 0
        %vm547 = vcmp.eq.s32.totalorder %v529, 0
        %548 = vrot.lane.b32.xlu0 %v463, 1
        %v549 = vpop.permute.xlu0 %548
        %550 = vrot.lane.b32.xlu0 %v465, 1
        %v551 = vpop.permute.xlu0 %550
        %552 = vrot.lane.b32.xlu0 %v467, 1
        %v553 = vpop.permute.xlu0 %552
        %554 = vrot.lane.b32.xlu0 %v469, 1
        %v555 = vpop.permute.xlu0 %554
        %556 = vrot.lane.b32.xlu0 %v464, 1
        %v557 = vpop.permute.xlu0 %556
        %558 = vrot.lane.b32.xlu0 %v466, 1
        %v559 = vpop.permute.xlu0 %558
        %560 = vrot.lane.b32.xlu0 %v468, 1
        %v561 = vpop.permute.xlu0 %560
        %562 = vrot.lane.b32.xlu0 %v470, 1
        %v563 = vpop.permute.xlu0 %562
        %vm564 = vcmp.lt.s32.totalorder %v528, 1
        %v565 = vsel %vm564, %v549, %v557
        %v566 = vsel %vm564, %v551, %v559
        %v567 = vsel %vm564, %v553, %v561
        %v568 = vsel %vm564, %v555, %v563
        %v569 = vsel %vm564, %v557, %v549
        %v570 = vsel %vm564, %v559, %v551
        %v571 = vsel %vm564, %v561, %v553
        %v572 = vsel %vm564, %v563, %v555
        %v573 = vsel %vm546, 1, 0
        %v574 = vsel %vm547, 1, 0
        %vm575 = vcmp.eq.s32.totalorder %v573, 1
        %vm576 = vcmp.eq.s32.totalorder %v574, 1
        %578 = vset.pattern.permute.xlu0 0
        %579 = vperm.xlu0 %578, %v535
        %v580 = vpop.permute.xlu0 %579
        %583 = vset.pattern.permute.xlu0 0
        %584 = vperm.xlu0 %583, %v536
        %v585 = vpop.permute.xlu0 %584
        %588 = vset.pattern.permute.xlu0 0
        %589 = vperm.xlu0 %588, %v537
        %v590 = vpop.permute.xlu0 %589
        %593 = vset.pattern.permute.xlu0 0
        %594 = vperm.xlu0 %593, %v538
        %v595 = vpop.permute.xlu0 %594
        %v597 = vsel %vm575, %v580, %v569
        %v598 = vsel %vm576, %v580, %v565
        %v599 = vsel %vm575, %v585, %v570
        %v600 = vsel %vm576, %v585, %v566
        %v601 = vsel %vm575, %v590, %v571
        %v602 = vsel %vm576, %v590, %v567
        %v603 = vsel %vm575, %v595, %v572
        %v604 = vsel %vm576, %v595, %v568
        %vm605 = vcmp.eq.s32.totalorder %v528, 255
        %vm606 = vcmp.eq.s32.totalorder %v529, 255
        %607 = vrot.lane.b32.xlu0 %v463, 127
        %v608 = vpop.permute.xlu0 %607
        %609 = vrot.lane.b32.xlu0 %v465, 127
        %v610 = vpop.permute.xlu0 %609
        %611 = vrot.lane.b32.xlu0 %v467, 127
        %v612 = vpop.permute.xlu0 %611
        %613 = vrot.lane.b32.xlu0 %v469, 127
        %v614 = vpop.permute.xlu0 %613
        %615 = vrot.lane.b32.xlu0 %v464, 127
        %v616 = vpop.permute.xlu0 %615
        %617 = vrot.lane.b32.xlu0 %v466, 127
        %v618 = vpop.permute.xlu0 %617
        %619 = vrot.lane.b32.xlu0 %v468, 127
        %v620 = vpop.permute.xlu0 %619
        %621 = vrot.lane.b32.xlu0 %v470, 127
        %v622 = vpop.permute.xlu0 %621
        %vm623 = vcmp.lt.s32.totalorder %v528, 127
        %v624 = vsel %vm623, %v608, %v616
        %v625 = vsel %vm623, %v610, %v618
        %v626 = vsel %vm623, %v612, %v620
        %v627 = vsel %vm623, %v614, %v622
        %v628 = vsel %vm623, %v616, %v608
        %v629 = vsel %vm623, %v618, %v610
        %v630 = vsel %vm623, %v620, %v612
        %v631 = vsel %vm623, %v622, %v614
        %v632 = vsel %vm605, 1, 0
        %v633 = vsel %vm606, 1, 0
        %vm634 = vcmp.eq.s32.totalorder %v632, 1
        %vm635 = vcmp.eq.s32.totalorder %v633, 1
        %637 = vset.pattern.permute.xlu0 1
        %638 = vperm.xlu0 %637, %v542
        %v639 = vpop.permute.xlu0 %638
        %642 = vset.pattern.permute.xlu0 1
        %643 = vperm.xlu0 %642, %v543
        %v644 = vpop.permute.xlu0 %643
        %647 = vset.pattern.permute.xlu0 1
        %648 = vperm.xlu0 %647, %v544
        %v649 = vpop.permute.xlu0 %648
        %652 = vset.pattern.permute.xlu0 1
        %653 = vperm.xlu0 %652, %v545
        %v654 = vpop.permute.xlu0 %653
        %v656 = vsel %vm634, %v639, %v624
        %v657 = vsel %vm635, %v639, %v628
        %v658 = vsel %vm634, %v644, %v625
        %v659 = vsel %vm635, %v644, %v629
        %v660 = vsel %vm634, %v649, %v626
        %v661 = vsel %vm635, %v649, %v630
        %v662 = vsel %vm634, %v654, %v627
        %v663 = vsel %vm635, %v654, %v631
        %v664 = vpack.c.bf16 %v599, %v597
        %v665 = vpack.c.bf16 %v600, %v598
        %v666 = vpack.c.bf16 %v603, %v601
        %v667 = vpack.c.bf16 %v604, %v602
        %668 = vst [vmem:[#allocation2] sm:$0xff] %v664
        %669 = vst [vmem:[#allocation2 + $0x8] sm:$0xff] %v665
        %670 = vst [vmem:[#allocation2 + $0x10] sm:$0xff] %v666
        %671 = vst [vmem:[#allocation2 + $0x18] sm:$0xff] %v667
        %v672 = vpack.c.bf16 %v465, %v463
        %v673 = vpack.c.bf16 %v466, %v464
        %v674 = vpack.c.bf16 %v469, %v467
        %v675 = vpack.c.bf16 %v470, %v468
        %676 = vst [vmem:[#allocation2 + $0x20] sm:$0xff] %v672
        %677 = vst [vmem:[#allocation2 + $0x28] sm:$0xff] %v673
        %678 = vst [vmem:[#allocation2 + $0x30] sm:$0xff] %v674
        %679 = vst [vmem:[#allocation2 + $0x38] sm:$0xff] %v675
        %v680 = vpack.c.bf16 %v658, %v656
        %v681 = vpack.c.bf16 %v659, %v657
        %v682 = vpack.c.bf16 %v662, %v660
        %v683 = vpack.c.bf16 %v663, %v661
        %684 = vst [vmem:[#allocation2 + $0x40] sm:$0xff] %v680
        %685 = vst [vmem:[#allocation2 + $0x48] sm:$0xff] %v681
        %686 = vst [vmem:[#allocation2 + $0x50] sm:$0xff] %v682
        %687 = vst [vmem:[#allocation2 + $0x58] sm:$0xff] %v683
        %v688 = vld [vmem:[%s6] sm:$0xf]
        %v689 = vld [vmem:[#allocation2] sm:$0xff]
        %v690 = vld [vmem:[#allocation2 + $0x8] sm:$0xff]
        %v691 = vld [vmem:[#allocation2 + $0x10] sm:$0xff]
        %v692 = vld [vmem:[#allocation2 + $0x18] sm:$0xff]
        %v693 = vld [vmem:[#allocation2 + $0x20] sm:$0xff]
        %v694 = vld [vmem:[#allocation2 + $0x28] sm:$0xff]
        %v695 = vld [vmem:[#allocation2 + $0x30] sm:$0xff]
        %v696 = vld [vmem:[#allocation2 + $0x38] sm:$0xff]
        %v697 = vld [vmem:[#allocation2 + $0x40] sm:$0xff]
        %v698 = vld [vmem:[#allocation2 + $0x48] sm:$0xff]
        %v699 = vld [vmem:[#allocation2 + $0x50] sm:$0xff]
        %v700 = vld [vmem:[#allocation2 + $0x58] sm:$0xff]
        %vm701 = vcmask 785408
        %v703 = vsel %vm701, %v688, 0
        %705 = vmatprep.subr.bf16.mxu0 %v690
        %706 = vmatpush1.bf16.msra.mxu0 %v689
        %707 = vmatprep.subr.bf16.mxu0 %v692
        %708 = vmatpush1.bf16.msra.mxu0 %v691
        %709 = vmatprep.subr.bf16.mxu0 %v694
        %710 = vmatpush1.bf16.msra.mxu0 %v693
        %711 = vmatprep.subr.bf16.mxu0 %v696
        %712 = vmatpush1.bf16.msra.mxu0 %v695
        %713 = vmatprep.subr.bf16.mxu0 %v698
        %714 = vmatpush1.bf16.msra.mxu0 %v697
        %715 = vmatprep.subr.bf16.mxu0 %v700
        %716 = vmatpush1.bf16.msra.mxu0 %v699
        %717 = vmatprep.subr.bf16.mxu0 0
        %718 = vmatpush1.bf16.msra.mxu0 0
        %719 = vmatprep.subr.bf16.mxu0 0
        %720 = vmatpush1.bf16.msra.mxu0 0
        %721 = vmatprep.subr.bf16.mxu0 0
        %722 = vmatpush1.bf16.msra.mxu0 0
        %723 = vmatprep.subr.bf16.mxu0 0
        %724 = vmatpush1.bf16.msra.mxu0 0
        %725 = vmatprep.subr.bf16.mxu0 0
        %726 = vmatpush1.bf16.msra.mxu0 0
        %727 = vmatprep.subr.bf16.mxu0 0
        %728 = vmatpush1.bf16.msra.mxu0 0
        %729 = vmatprep.subr.bf16.mxu0 0
        %730 = vmatpush1.bf16.msra.mxu0 0
        %731 = vmatprep.subr.bf16.mxu0 0
        %732 = vmatpush1.bf16.msra.mxu0 0
        %733 = vmatprep.subr.bf16.mxu0 0
        %734 = vmatpush1.bf16.msra.mxu0 0
        %735 = vmatprep.subr.bf16.mxu0 0
        %736 = vmatpush1.bf16.msra.mxu0 0
        %737 = vmatprep.mubr.bf16.mxu0 0
        %738 = vmatmul.mubr.bf16.gmra.mrb[0].mxu0 %v703
        %v739 = vpop.f32.mrb[0].mxu0
        %v740 = vadd.f32 0.0, %v739
        %v741 = vpop.f32.mrb[0].mxu0
        %v742 = vadd.f32 0.0, %v741
        %v743 = vpop.f32.mrb[0].mxu0
        %v744 = vpop.f32.mrb[0].mxu0
        %745 = vdwg.mxu0
        %746 = vst [vmem:[%s311] sm:$0xff] %v740
        %747 = vst [vmem:[%s311 + $0x8] sm:$0xff] %v742
        %748 = vst [vmem:[%s311 + $0x10] sm:$0xff] %v329
        %749 = vst [vmem:[%s311 + $0x18] sm:$0xff] %v330
        %s750 = sand.u32 %s202, 1
        %s751 = scalar_lea.sflag [#allocation4], %s750
        %s752 = sand.u32 %s202, 1
        %s753 = smul.addr %s752, 32
        %s754 = scalar_lea.vmem [#allocation3], %s753
        // Predicated region
        $region49: #{tpu_custom_call.1} parent=47 // pred_check
          %p755 = pneg %p212
        $region50: #{tpu_custom_call.1} parent=47 // pred_check_branch
          %757 = sbr.rel (%p755) target = $region52
        $region51: #{tpu_custom_call.1} parent=47 // pred_region
          %s758 = smul.u32 2, %s26
          %s760 = ssub.s32 512, 512
          %761 = vsyncadd %s751, %s760
          %s762 = smul.addr %s25, 8
          %s763 = sadd.s32 %s758, %s762
          %s764 = smul.addr %s763, 128
          %s765 = scalar_lea.hbm %s7, %s764
          %s766 = sshll.u32 %s754, 4
          %s767 = int_to_ptr.vmem [resolvable:$true] %s766
          %772 = dma.vmem_to_hbm [thread:$0]  %s767, 512, %s765, %s751, 256, 512, 16
        $region52: #{tpu_custom_call.1} parent=47 // pred_fallthru
          _
      $region48: #{tpu_custom_call.1} parent=5 // pred_fallthru
        _
      %p773 = scmp.le.s32.totalorder 2, %s16
      // Predicated region
      $region53: #{tpu_custom_call.1} parent=5 // pred_check
        %p774 = pneg %p773
      $region54: #{tpu_custom_call.1} parent=5 // pred_check_branch
        %776 = sbr.rel (%p774) target = $region56
      $region55: #{tpu_custom_call.1} parent=5 // pred_region
        %s777 = ssub.s32 %s16, 2
        // Predicated region
        $region57: #{tpu_custom_call.1} parent=55 // pred_check
          %p778 = pneg %p218
        $region58: #{tpu_custom_call.1} parent=55 // pred_check_branch
          %780 = sbr.rel (%p778) target = $region60
        $region59: #{tpu_custom_call.1} parent=55 // pred_region
          %s781 = sand.u32 %s203, 1
          %s782 = scalar_lea.sflag [#allocation4], %s781
          %s783 = sand.u32 %s203, 1
          %s784 = smul.addr %s783, 32
          %s785 = scalar_lea.vmem [#allocation3], %s784
          %786 = dma.done %s782, 512
        $region60: #{tpu_custom_call.1} parent=55 // pred_fallthru
          _
      $region56: #{tpu_custom_call.1} parent=5 // pred_fallthru
        _
    $region6: #{tpu_custom_call.1} parent=1 // loop_footer
      %s20 = sadd.s32 1, %s16
    $region7: #{tpu_custom_call.1} parent=1 // loop_footer_branch
      %15 = sbr.rel target = $region3
    $region8: #{tpu_custom_call.1} parent=1 // loop_exit
      _
    %787 = vsyncpa [#allocation4], 1
    %s788 = scalar_lea.sflag [#allocation4], 1
    %789 = vsyncpa %s788, 1

</llo_original>
